<compile_context>
chip_gen: v7x
topology: tpu7x:2x2x1
jax: 0.10.0
libtpu: 0.0.40
codegen_flags: <defaults>
</compile_context>

<pallas_src>
import jax
import jax.numpy as jnp
from jax.experimental import pallas as pl
from jax.experimental.pallas import tpu as pltpu

_LANE = 128
_SUBLANE = 8
# ~2 MiB of f32 per block.
_TARGET_BLOCK_ELEMS = 512 * 1024
# Widest lane-dense slab candidates (all multiples of 128).
_LANE_CANDIDATES = (8192, 4096, 2048, 1024, 512, 256, 128)


def _log1p_kernel(x_ref, o_ref):
    # Elementwise hot path: log(1 + x) on the current VMEM tile
    # (VPU add + EUP log; streaming kernel, HBM-bound on v5e/v6e).
    o_ref[...] = jnp.log(1.0 + x_ref[...])


def log_transform(x: jax.Array) -> jax.Array:
    """Elementwise log(1 + x), matching torch.log(1 + x) semantics."""
    orig_shape = x.shape
    orig_dtype = x.dtype

    flat = x.reshape(-1)  # free (bitcast) for contiguous inputs
    n = flat.shape[0]

    # Pad (rarely) only to a multiple of the lane width -- NOT to a multiple
    # of the whole block; ragged final row-blocks are handled by the cdiv grid.
    n_pad = pl.cdiv(n, _LANE) * _LANE
    padded = n_pad != n
    if padded:
        flat = jnp.pad(flat, (0, n_pad - n))

    # Lane-dense slab: widest candidate that tiles n_pad exactly.
    lanes = next(l for l in _LANE_CANDIDATES if n_pad % l == 0)
    rows = n_pad // lanes
    x2d = flat.reshape(rows, lanes)  # free reshape

    # Rows per block: ~_TARGET_BLOCK_ELEMS elements, multiple of 8 (sublanes),
    # or the full row extent when the array is smaller than one block.
    target_rows = max(_SUBLANE,
                      (_TARGET_BLOCK_ELEMS // lanes) // _SUBLANE * _SUBLANE)
    block_rows = target_rows if rows > target_rows else rows
    grid = (pl.cdiv(rows, block_rows),)

    out2d = pl.pallas_call(
        _log1p_kernel,
        out_shape=jax.ShapeDtypeStruct((rows, lanes), orig_dtype),
        grid_spec=pltpu.PrefetchScalarGridSpec(
            num_scalar_prefetch=0,
            grid=grid,
            in_specs=[pl.BlockSpec((block_rows, lanes), lambda i: (i, 0))],
            out_specs=pl.BlockSpec((block_rows, lanes), lambda i: (i, 0)),
        ),
        compiler_params=pltpu.CompilerParams(
            dimension_semantics=("parallel",),
            vmem_limit_bytes=32 * 1024 * 1024,
        ),
    )(x2d)

    out_flat = out2d.reshape(-1)
    if padded:
        out_flat = out_flat[:n]
    return out_flat.reshape(orig_shape)


if __name__ == "__main__":
    key = jax.random.PRNGKey(0)
    # Small NCHW input consistent with an EEGNet-style feature map.
    B, C, H, W = 2, 4, 16, 16
    # Keep values > -1 so log(1+x) is well defined (inputs are non-negative
    # activations/power features in the original usage).
    x = jax.random.uniform(key, (B, C, H, W), dtype=jnp.float32,
                           minval=0.0, maxval=4.0)

    y = log_transform(x)
    y = jax.block_until_ready(y)

    # Correctness check against plain JAX reference (torch.log(1 + x) parity;
    # intentionally NOT log1p to preserve strict parity with the module).
    ref = jnp.log(1.0 + x)
    assert y.shape == x.shape and y.dtype == x.dtype
    assert jnp.allclose(y, ref, atol=1e-6, rtol=1e-6)

    print("KERNEL_OK")
</pallas_src>

<mosaic_0001>
module attributes {stable_mosaic.version = 11 : i64} {
  func.func @_log1p_kernel(%arg0: i32, %arg1: memref<1x2048xf32, #tpu.memory_space<vmem>>, %arg2: memref<1x2048xf32, #tpu.memory_space<vmem>>) attributes {dimension_semantics = [#tpu.dimension_semantics<parallel>], iteration_bounds = array<i64: 1>, scalar_prefetch = 0 : i64, scratch_operands = 0 : i64, tpu.core_type = #tpu.core_type<tc>, window_params = [{transform_indices = @transform_0, window_bounds = array<i64: 1, 2048>}, {transform_indices = @transform_1, window_bounds = array<i64: 1, 2048>}]} {
    %c0 = arith.constant 0 : index
    %c0_0 = arith.constant 0 : index
    %0 = vector.load %arg1[%c0, %c0_0] : memref<1x2048xf32, #tpu.memory_space<vmem>>, vector<1x2048xf32>
    %cst = arith.constant 1.000000e+00 : f32
    %1 = vector.broadcast %cst : f32 to vector<1x2048xf32>
    %2 = arith.addf %1, %0 : vector<1x2048xf32>
    %3 = math.log %2 : vector<1x2048xf32>
    %c0_1 = arith.constant 0 : index
    %c0_2 = arith.constant 0 : index
    %4 = vector.load %arg2[%c0_1, %c0_2] : memref<1x2048xf32, #tpu.memory_space<vmem>>, vector<1x2048xf32>
    tpu.vector_store %arg2[%c0_1, %c0_2], %3 {strides = array<i32>} : memref<1x2048xf32, #tpu.memory_space<vmem>>, vector<1x2048xf32>,
    return
  }
  func.func @transform_0(%arg0: i32) -> (i32, i32) {
    %c0_i32 = arith.constant 0 : i32
    %c0_i32_0 = arith.constant 0 : i32
    return %arg0, %c0_i32 : i32, i32
  }
  func.func @transform_1(%arg0: i32) -> (i32, i32) {
    %c0_i32 = arith.constant 0 : i32
    %c0_i32_0 = arith.constant 0 : i32
    return %arg0, %c0_i32 : i32, i32
  }
}

</mosaic_0001>

<llo_original>
// kernel: tpu_custom_call.1
$region0: #{tpu_custom_call.1}
  #allocation0 [shape = 'u32[]', space=smem, size = 0x4, offset = 0x4, fixed_abs, tag = 'smem constant byte address 0x4 - core index']
  #allocation1 [shape = 'u32[144,128]{1,0:T(1,128)}', space=vmem, size = 0x12000, scoped, tag = 'internal scratch']
  %s0 = inlined_call_operand.hbm [shape: f32[1,2048], index: 0, kind: input, shape index: {}]
  %s1 = inlined_call_operand.hbm [shape: f32[1,2048], index: 1, kind: output, shape index: {}]
  %s2 = sld [smem:[#allocation0]]
  $region18: #{tpu_custom_call.1} parent=0
    _
  %s4 = ssub.s32 1, %s2
  %s5 = scalar_select 0, %s4, %s2
  $region1: #{tpu_custom_call.1} parent=0
    #allocation2 [shape = 'u8[8192]{0}', space=vmem, size = 0x2000, scoped, tag = 'input window, operand 0, single buffered']
    #allocation3 [shape = 's32[1]{0}', space=sflag, size = 0x4, scoped, tag = 'scoped memory for tpu_custom_call.1']
    #allocation4 [shape = 's32[1]{0}', space=sflag, size = 0x4, scoped, tag = 'scoped memory for tpu_custom_call.1']
    #allocation5 [shape = 'u8[8192]{0}', space=vmem, size = 0x2000, scoped, tag = 'output window, operand 0, single buffered']
    %6 = vsyncpa [#allocation3], 0
    %7 = vsyncpa [#allocation4], 0
    // Predicated region
    $region2: #{tpu_custom_call.1} parent=1 // pred_check
      _
    $region3: #{tpu_custom_call.1} parent=1 // pred_check_branch
      %9 = sbr.rel (0) target = $region5
    $region4: #{tpu_custom_call.1} parent=1 // pred_region
      %s11 = ssub.s32 256, 256
      %12 = vsyncadd [#allocation3], %s11
      %s14 = sshll.u32 [#allocation2], 4
      %s15 = int_to_ptr.vmem [resolvable:$true] %s14
      %17 = dma.hbm_to_vmem [thread:$0]  %s0, 256, %s15, [#allocation3]
    $region5: #{tpu_custom_call.1} parent=1 // pred_fallthru
      _
    // Predicated region
    $region6: #{tpu_custom_call.1} parent=1 // pred_check
      _
    $region7: #{tpu_custom_call.1} parent=1 // pred_check_branch
      %19 = sbr.rel (0) target = $region9
    $region8: #{tpu_custom_call.1} parent=1 // pred_region
      %20 = dma.done [#allocation3], 256
    $region9: #{tpu_custom_call.1} parent=1 // pred_fallthru
      _
    %v21 = vld [vmem:[#allocation2] sm:$0xff]
    %v22 = vld [vmem:[#allocation2 + $0x8] sm:$0xff]
    %v23 = vadd.f32 %v21, 1.0
    %v24 = vadd.f32 %v22, 1.0
    %v25 = vlog2.pop %v23
    %v26 = vmul.f32 %v25, 0.6931472
    %v27 = vlog2.pop %v24
    %v28 = vmul.f32 %v27, 0.6931472
    %29 = vst [vmem:[#allocation5] sm:$0xff] %v26
    %30 = vst [vmem:[#allocation5 + $0x8] sm:$0xff] %v28
    // Predicated region
    $region10: #{tpu_custom_call.1} parent=1 // pred_check
      _
    $region11: #{tpu_custom_call.1} parent=1 // pred_check_branch
      %32 = sbr.rel (0) target = $region13
    $region12: #{tpu_custom_call.1} parent=1 // pred_region
      %s34 = ssub.s32 256, 256
      %35 = vsyncadd [#allocation4], %s34
      %s37 = sshll.u32 [#allocation5], 4
      %s38 = int_to_ptr.vmem [resolvable:$true] %s37
      %40 = dma.vmem_to_hbm [thread:$0]  %s38, 256, %s1, [#allocation4]
    $region13: #{tpu_custom_call.1} parent=1 // pred_fallthru
      _
    // Predicated region
    $region14: #{tpu_custom_call.1} parent=1 // pred_check
      _
    $region15: #{tpu_custom_call.1} parent=1 // pred_check_branch
      %42 = sbr.rel (0) target = $region17
    $region16: #{tpu_custom_call.1} parent=1 // pred_region
      %43 = dma.done [#allocation4], 256
    $region17: #{tpu_custom_call.1} parent=1 // pred_fallthru
      _
    %44 = vsyncpa [#allocation3], 1
    %45 = vsyncpa [#allocation4], 1

</llo_original>
